<compile_context>
chip_gen: v6e
topology: v6e:2x2x1
jax: 0.10.0
libtpu: 0.0.40
codegen_flags: <defaults>
</compile_context>

<pallas_src>
import math

import jax
import jax.numpy as jnp
from jax.experimental import pallas as pl
from jax.experimental.pallas import tpu as pltpu

_INPUT_DB_BUDGET = 32 << 20   # bytes allowed for the double-buffered input tile
_VMEM_LIMIT_BYTES = 48 << 20  # scoped VMEM limit: safe on v5e / v6e / v7x


def _std_kernel(x_ref, o_ref):
    # x_ref: (tile_rows, T); o_ref: (tile_rows, 1)
    x = x_ref[...].astype(jnp.float32)
    n = x.shape[-1]
    inv_n = 1.0 / n
    # torch returns NaN for std with correction=1 when n == 1; match that.
    inv_nm1 = (1.0 / (n - 1)) if n > 1 else float("nan")
    mean = jnp.sum(x, axis=-1, keepdims=True) * inv_n
    d = x - mean
    var = jnp.sum(d * d, axis=-1, keepdims=True) * inv_nm1
    o_ref[...] = jnp.sqrt(var).astype(o_ref.dtype)


def _choose_tile_rows(rows, T, itemsize):
    """Largest row tile whose double-buffered input fits the VMEM budget."""
    tr = _INPUT_DB_BUDGET // (2 * T * itemsize)
    tr = max(8, (tr // 8) * 8)          # multiple of the 8-sublane tile
    if tr < rows:
        return tr                        # budget-limited (multiple of 8)
    if rows >= 16:
        # Whole problem fits one block; split into two so the 'parallel' grid
        # axis can use both TensorCores on v7x.  round_up(ceil(rows/2), 8).
        return -(-((rows + 1) // 2) // 8) * 8
    return rows                          # tiny: one full block (block == dims)


def std_layer(x, dim):
    """std along `dim`, keepdim=True, unbiased — matches torch.Tensor.std."""
    ndim = x.ndim
    dim = dim % ndim
    # Fast path: reduction axis already last (FBCNet's dim=3 case) — the
    # reshape below is free.  Otherwise moveaxis costs one HBM transpose pass.
    moved = dim != ndim - 1
    if moved:
        x = jnp.moveaxis(x, dim, -1)

    lead_shape = x.shape[:-1]
    T = x.shape[-1]
    rows = math.prod(lead_shape) if lead_shape else 1
    x2d = x.reshape(rows, T)

    itemsize = jnp.dtype(x.dtype).itemsize
    tr = _choose_tile_rows(rows, T, itemsize)
    grid = (pl.cdiv(rows, tr),)

    cost = pl.CostEstimate(
        flops=3 * rows * T + 4 * rows,
        transcendentals=0,
        bytes_accessed=rows * T * itemsize + rows * itemsize,
    )

    out2d = pl.pallas_call(
        _std_kernel,
        out_shape=jax.ShapeDtypeStruct((rows, 1), x.dtype),
        grid_spec=pltpu.PrefetchScalarGridSpec(
            num_scalar_prefetch=0,
            grid=grid,
            in_specs=[pl.BlockSpec((tr, T), lambda i: (i, 0))],
            out_specs=pl.BlockSpec((tr, 1), lambda i: (i, 0)),
        ),
        compiler_params=pltpu.CompilerParams(
            dimension_semantics=("parallel",),
            vmem_limit_bytes=_VMEM_LIMIT_BYTES,
        ),
        cost_estimate=cost,
    )(x2d)

    out = out2d.reshape(lead_shape + (1,))
    if moved:
        out = jnp.moveaxis(out, -1, dim)
    return out


if __name__ == "__main__":
    key = jax.random.PRNGKey(0)
    # FBCNet-style input: (batch, n_filterbands, n_channels, n_timepoints)
    B, F, C, T = 2, 4, 16, 16
    x = jax.random.normal(key, (B, F, C, T), dtype=jnp.float32)

    out = std_layer(x, dim=3)
    out = jax.block_until_ready(out)

    # reference check against unbiased std (ddof=1), keepdim
    ref = jnp.std(x, axis=3, keepdims=True, ddof=1)
    assert out.shape == (B, F, C, 1), out.shape
    assert jnp.allclose(out, ref, atol=1e-5, rtol=1e-5)

    print("KERNEL_OK")
</pallas_src>

<mosaic_0001>
module attributes {stable_mosaic.version = 11 : i64} {
  func.func @_std_kernel(%arg0: i32, %arg1: memref<64x16xf32, #tpu.memory_space<vmem>>, %arg2: memref<64x1xf32, #tpu.memory_space<vmem>>) attributes {dimension_semantics = [#tpu.dimension_semantics<parallel>], iteration_bounds = array<i64: 2>, scalar_prefetch = 0 : i64, scratch_operands = 0 : i64, tpu.core_type = #tpu.core_type<tc>, window_params = [{transform_indices = @transform_0, window_bounds = array<i64: 64, 16>}, {transform_indices = @transform_1, window_bounds = array<i64: 64, 1>}]} {
    %c0 = arith.constant 0 : index
    %c0_0 = arith.constant 0 : index
    %0 = vector.load %arg1[%c0, %c0_0] : memref<64x16xf32, #tpu.memory_space<vmem>>, vector<64x16xf32>
    %cst = arith.constant dense<0.000000e+00> : vector<64xf32>
    %1 = vector.multi_reduction <add>, %0, %cst [1] : vector<64x16xf32> to vector<64xf32>
    %2 = vector.shape_cast %1 : vector<64xf32> to vector<64x1xf32>
    %cst_1 = arith.constant 6.250000e-02 : f32
    %3 = vector.broadcast %cst_1 : f32 to vector<64x1xf32>
    %4 = arith.mulf %2, %3 : vector<64x1xf32>
    %5 = vector.broadcast %4 : vector<64x1xf32> to vector<64x16xf32>
    %6 = arith.subf %0, %5 : vector<64x16xf32>
    %7 = arith.mulf %6, %6 : vector<64x16xf32>
    %cst_2 = arith.constant dense<0.000000e+00> : vector<64xf32>
    %8 = vector.multi_reduction <add>, %7, %cst_2 [1] : vector<64x16xf32> to vector<64xf32>
    %9 = vector.shape_cast %8 : vector<64xf32> to vector<64x1xf32>
    %cst_3 = arith.constant 0.0666666701 : f32
    %10 = vector.broadcast %cst_3 : f32 to vector<64x1xf32>
    %11 = arith.mulf %9, %10 : vector<64x1xf32>
    %12 = math.sqrt %11 : vector<64x1xf32>
    %c0_4 = arith.constant 0 : index
    %c0_5 = arith.constant 0 : index
    %13 = vector.load %arg2[%c0_4, %c0_5] : memref<64x1xf32, #tpu.memory_space<vmem>>, vector<64x1xf32>
    tpu.vector_store %arg2[%c0_4, %c0_5], %12 {strides = array<i32>} : memref<64x1xf32, #tpu.memory_space<vmem>>, vector<64x1xf32>,
    return
  }
  func.func @transform_0(%arg0: i32) -> (i32, i32) {
    %c0_i32 = arith.constant 0 : i32
    %c0_i32_0 = arith.constant 0 : i32
    return %arg0, %c0_i32 : i32, i32
  }
  func.func @transform_1(%arg0: i32) -> (i32, i32) {
    %c0_i32 = arith.constant 0 : i32
    %c0_i32_0 = arith.constant 0 : i32
    return %arg0, %c0_i32 : i32, i32
  }
}

</mosaic_0001>

<llo_original>
// kernel: tpu_custom_call.1
$region0: #{tpu_custom_call.1}
  #allocation0 [shape = 'u32[]', space=smem, size = 0x4, offset = 0x4, fixed_abs, tag = 'smem constant byte address 0x4 - core index']
  #allocation1 [shape = 'u32[144,128]{1,0:T(1,128)}', space=vmem, size = 0x12000, scoped, tag = 'internal scratch']
  %s0 = inlined_call_operand.vmem [shape: f32[128,16], index: 0, kind: input, shape index: {}]
  %s1 = inlined_call_operand.vmem [shape: f32[128,1], index: 1, kind: output, shape index: {}]
  %s2 = sld [smem:[#allocation0]]
  $region37: #{tpu_custom_call.1} parent=0
    _
  %s4 = ssub.s32 1, %s2
  %s5 = scalar_select 0, %s4, %s2
  loop: start=0, step=1, limit=4
  $region2: #{tpu_custom_call.1} parent=0 // loop_pre_header
    _
  $region3: #{tpu_custom_call.1} parent=0 // loop_header
    %s7 = sphi 0, %s11
    %p8 = scmp.ge.s32.totalorder %s7, 4
    %s17 = sphi 0, %s19
    %s20 = sphi 0, %s17
    %s21 = sphi 0, %s20
    %s37 = sphi 0, %s21
    %s43 = sphi 0, %s45
    %s46 = sphi 0, %s43
    %s47 = sphi 0, %s46
    %s63 = sphi 0, %s47
  $region4: #{tpu_custom_call.1} parent=0 // loop_header_branch
    %10 = sbr.rel (%p8) target = $region8
  $region5: #{tpu_custom_call.1} parent=0 // loop_body
    %s12 = ssub.s32 %s7, 1
    %s13 = ssub.s32 %s7, 2
    %s14 = sadd.s32 %s7, 1
    %s15 = ssub.s32 %s7, %s14
    %p16 = scmp.eq.s32.totalorder %s15, 0
    %s18 = sadd.s32 %s17, 1
    %s19 = scalar_select %p16, %s17, %s18
    %p22 = pneg %p16
    %p23 = scmp.eq.s32.totalorder %s7, 1
    %p24 = por %p22, %p23
    %p25 = scmp.ne.s32.totalorder %s17, %s20
    %p26 = scmp.eq.s32.totalorder %s7, 0
    %p27 = por %p25, %p26
    %p28 = scmp.ne.s32.totalorder %s17, %s20
    %p29 = scmp.eq.s32.totalorder %s12, 1
    %p30 = por %p28, %p29
    %p31 = scmp.ne.s32.totalorder %s20, %s21
    %p32 = scmp.eq.s32.totalorder %s12, 0
    %p33 = por %p31, %p32
    %p34 = scmp.ne.s32.totalorder %s20, %s21
    %p35 = scmp.eq.s32.totalorder %s13, 1
    %p36 = por %p34, %p35
    %p38 = scmp.ne.s32.totalorder %s21, %s37
    %p39 = scmp.eq.s32.totalorder %s13, 0
    %p40 = por %p38, %p39
    %s41 = ssub.s32 %s7, %s14
    %p42 = scmp.eq.s32.totalorder %s41, 0
    %s44 = sadd.s32 %s43, 1
    %s45 = scalar_select %p42, %s43, %s44
    %p48 = pneg %p42
    %p49 = scmp.eq.s32.totalorder %s7, 1
    %p50 = por %p48, %p49
    %p51 = scmp.ne.s32.totalorder %s43, %s46
    %p52 = scmp.eq.s32.totalorder %s7, 0
    %p53 = por %p51, %p52
    %p54 = scmp.ne.s32.totalorder %s43, %s46
    %p55 = scmp.eq.s32.totalorder %s12, 1
    %p56 = por %p54, %p55
    %p57 = scmp.ne.s32.totalorder %s46, %s47
    %p58 = scmp.eq.s32.totalorder %s12, 0
    %p59 = por %p57, %p58
    %p60 = scmp.ne.s32.totalorder %s46, %s47
    %p61 = scmp.eq.s32.totalorder %s13, 1
    %p62 = por %p60, %p61
    %p64 = scmp.ne.s32.totalorder %s47, %s63
    %p65 = scmp.eq.s32.totalorder %s13, 0
    %p66 = por %p64, %p65
    %p67 = scmp.le.s32.totalorder 1, %s7
    %p68 = scmp.lt.s32.totalorder %s7, 3
    %p69 = pnand %p67, %p68
    %p70 = pneg %p69
    // Predicated region
    $region9: #{tpu_custom_call.1} parent=5 // pred_check
      _
    $region10: #{tpu_custom_call.1} parent=5 // pred_check_branch
      %72 = sbr.rel (%p69) target = $region12
    $region11: #{tpu_custom_call.1} parent=5 // pred_region
      %s73 = ssub.s32 %s7, 1
    $region12: #{tpu_custom_call.1} parent=5 // pred_fallthru
      _
    %p74 = scmp.lt.s32.totalorder %s7, 2
    // Predicated region
    $region13: #{tpu_custom_call.1} parent=5 // pred_check
      %p75 = pneg %p74
    $region14: #{tpu_custom_call.1} parent=5 // pred_check_branch
      %77 = sbr.rel (%p75) target = $region16
    $region15: #{tpu_custom_call.1} parent=5 // pred_region
      // Predicated region
      $region17: #{tpu_custom_call.1} parent=15 // pred_check
        %p78 = pneg %p27
      $region18: #{tpu_custom_call.1} parent=15 // pred_check_branch
        %80 = sbr.rel (%p78) target = $region20
      $region19: #{tpu_custom_call.1} parent=15 // pred_region
        %s81 = smul.u32 8, %s7
        %p82 = scmp.lt.s32.totalorder %s81, 15
        %s83 = scalar_select %p82, %s81, 15
        %s84 = smul.addr %s83, 8
        %s85 = scalar_lea.vmem %s0, %s84
        %s86 = smul.u32 8, %s7
      $region20: #{tpu_custom_call.1} parent=15 // pred_fallthru
        _
    $region16: #{tpu_custom_call.1} parent=5 // pred_fallthru
      _
    %p87 = scmp.le.s32.totalorder 1, %s7
    %p88 = scmp.lt.s32.totalorder %s7, 3
    %p89 = pnand %p87, %p88
    %p90 = pneg %p89
    // Predicated region
    $region21: #{tpu_custom_call.1} parent=5 // pred_check
      _
    $region22: #{tpu_custom_call.1} parent=5 // pred_check_branch
      %92 = sbr.rel (%p89) target = $region24
    $region23: #{tpu_custom_call.1} parent=5 // pred_region
      %s93 = ssub.s32 %s7, 1
      %s94 = smul.u32 8, %s12
      %p95 = scmp.lt.s32.totalorder %s94, 15
      %s96 = scalar_select %p95, %s94, 15
      %s97 = smul.addr %s96, 8
      %s98 = scalar_lea.vmem %s0, %s97
      %p99 = pneg %p33
      %p100 = pneg %p30
      %p101 = pneg %p59
      %p102 = pneg %p56
      %s103 = smul.u32 8, %s12
      %p104 = scmp.lt.s32.totalorder %s103, 15
      %s105 = scalar_select %p104, %s103, 15
      %s106 = smul.addr %s105, 8
      %s107 = scalar_lea.vmem %s1, %s106
      %s108 = smul.u32 8, %s12
      %p109 = scmp.lt.s32.totalorder %s108, 15
      %s110 = scalar_select %p109, %s108, 15
      %s111 = smul.addr %s110, 8
      %s112 = scalar_lea.vmem %s0, %s111
      %s113 = smul.u32 8, %s12
      %s114 = smul.u32 8, %s12
      %p115 = scmp.lt.s32.totalorder %s114, 15
      %s116 = scalar_select %p115, %s114, 15
      %s117 = smul.addr %s116, 8
      %s118 = scalar_lea.vmem %s1, %s117
      %s119 = smul.u32 8, %s12
      %v120 = vld [vmem:[%s112] sm:$0xff]
      %v121 = vld [vmem:[%s112 + $0x8] sm:$0xff]
      %v122 = vld [vmem:[%s112 + $0x10] sm:$0xff]
      %v123 = vld [vmem:[%s112 + $0x18] sm:$0xff]
      %v124 = vld [vmem:[%s112 + $0x20] sm:$0xff]
      %v125 = vld [vmem:[%s112 + $0x28] sm:$0xff]
      %v126 = vld [vmem:[%s112 + $0x30] sm:$0xff]
      %v127 = vld [vmem:[%s112 + $0x38] sm:$0xff]
      %vm128 = vcmask 130048
      %v129 = vsel %vm128, %v120, 0.0
      %130 = vadd.xlane.f32.xlu0 %v129
      %v131 = vpop.xlane.xlu0 %130
      %v132 = vsel %vm128, %v121, 0.0
      %133 = vadd.xlane.f32.xlu0 %v132
      %v134 = vpop.xlane.xlu0 %133
      %v135 = vsel %vm128, %v122, 0.0
      %136 = vadd.xlane.f32.xlu0 %v135
      %v137 = vpop.xlane.xlu0 %136
      %v138 = vsel %vm128, %v123, 0.0
      %139 = vadd.xlane.f32.xlu0 %v138
      %v140 = vpop.xlane.xlu0 %139
      %v141 = vsel %vm128, %v124, 0.0
      %142 = vadd.xlane.f32.xlu0 %v141
      %v143 = vpop.xlane.xlu0 %142
      %v144 = vsel %vm128, %v125, 0.0
      %145 = vadd.xlane.f32.xlu0 %v144
      %v146 = vpop.xlane.xlu0 %145
      %v147 = vsel %vm128, %v126, 0.0
      %148 = vadd.xlane.f32.xlu0 %v147
      %v149 = vpop.xlane.xlu0 %148
      %v150 = vsel %vm128, %v127, 0.0
      %151 = vadd.xlane.f32.xlu0 %v150
      %v152 = vpop.xlane.xlu0 %151
      %v153 = vmul.f32 %v131, 0.0625
      %v154 = vmul.f32 %v134, 0.0625
      %v155 = vmul.f32 %v137, 0.0625
      %v156 = vmul.f32 %v140, 0.0625
      %v157 = vmul.f32 %v143, 0.0625
      %v158 = vmul.f32 %v146, 0.0625
      %v159 = vmul.f32 %v149, 0.0625
      %v160 = vmul.f32 %v152, 0.0625
      %v161 = vsub.f32 %v120, %v153
      %v162 = vsub.f32 %v121, %v154
      %v163 = vsub.f32 %v122, %v155
      %v164 = vsub.f32 %v123, %v156
      %v165 = vsub.f32 %v124, %v157
      %v166 = vsub.f32 %v125, %v158
      %v167 = vsub.f32 %v126, %v159
      %v168 = vsub.f32 %v127, %v160
      %v169 = vmul.f32 %v161, %v161
      %v170 = vmul.f32 %v162, %v162
      %v171 = vmul.f32 %v163, %v163
      %v172 = vmul.f32 %v164, %v164
      %v173 = vmul.f32 %v165, %v165
      %v174 = vmul.f32 %v166, %v166
      %v175 = vmul.f32 %v167, %v167
      %v176 = vmul.f32 %v168, %v168
      %v177 = vsel %vm128, %v169, 0.0
      %178 = vadd.xlane.f32.xlu0 %v177
      %v179 = vpop.xlane.xlu0 %178
      %v180 = vsel %vm128, %v170, 0.0
      %181 = vadd.xlane.f32.xlu0 %v180
      %v182 = vpop.xlane.xlu0 %181
      %v183 = vsel %vm128, %v171, 0.0
      %184 = vadd.xlane.f32.xlu0 %v183
      %v185 = vpop.xlane.xlu0 %184
      %v186 = vsel %vm128, %v172, 0.0
      %187 = vadd.xlane.f32.xlu0 %v186
      %v188 = vpop.xlane.xlu0 %187
      %v189 = vsel %vm128, %v173, 0.0
      %190 = vadd.xlane.f32.xlu0 %v189
      %v191 = vpop.xlane.xlu0 %190
      %v192 = vsel %vm128, %v174, 0.0
      %193 = vadd.xlane.f32.xlu0 %v192
      %v194 = vpop.xlane.xlu0 %193
      %v195 = vsel %vm128, %v175, 0.0
      %196 = vadd.xlane.f32.xlu0 %v195
      %v197 = vpop.xlane.xlu0 %196
      %v198 = vsel %vm128, %v176, 0.0
      %199 = vadd.xlane.f32.xlu0 %v198
      %v200 = vpop.xlane.xlu0 %199
      %v201 = vmul.f32 %v179, 0.06666667
      %v202 = vmul.f32 %v182, 0.06666667
      %v203 = vmul.f32 %v185, 0.06666667
      %v204 = vmul.f32 %v188, 0.06666667
      %v205 = vmul.f32 %v191, 0.06666667
      %v206 = vmul.f32 %v194, 0.06666667
      %v207 = vmul.f32 %v197, 0.06666667
      %v208 = vmul.f32 %v200, 0.06666667
      %v209 = vrsqrt.pop %v201
      %v210 = vmul.f32 %v201, %v209
      %vm211 = vcmp.eq.f32.partialorder %v201, inf
      %v212 = vsel %vm211, %v201, %v210
      %vm213 = vcmp.eq.f32.partialorder %v201, 0.0
      %v214 = vand.u32 %v201, 2147483648
      %v215 = vsel %vm213, %v214, %v212
      %v216 = vrsqrt.pop %v202
      %v217 = vmul.f32 %v202, %v216
      %vm218 = vcmp.eq.f32.partialorder %v202, inf
      %v219 = vsel %vm218, %v202, %v217
      %vm220 = vcmp.eq.f32.partialorder %v202, 0.0
      %v221 = vand.u32 %v202, 2147483648
      %v222 = vsel %vm220, %v221, %v219
      %v223 = vrsqrt.pop %v203
      %v224 = vmul.f32 %v203, %v223
      %vm225 = vcmp.eq.f32.partialorder %v203, inf
      %v226 = vsel %vm225, %v203, %v224
      %vm227 = vcmp.eq.f32.partialorder %v203, 0.0
      %v228 = vand.u32 %v203, 2147483648
      %v229 = vsel %vm227, %v228, %v226
      %v230 = vrsqrt.pop %v204
      %v231 = vmul.f32 %v204, %v230
      %vm232 = vcmp.eq.f32.partialorder %v204, inf
      %v233 = vsel %vm232, %v204, %v231
      %vm234 = vcmp.eq.f32.partialorder %v204, 0.0
      %v235 = vand.u32 %v204, 2147483648
      %v236 = vsel %vm234, %v235, %v233
      %v237 = vrsqrt.pop %v205
      %v238 = vmul.f32 %v205, %v237
      %vm239 = vcmp.eq.f32.partialorder %v205, inf
      %v240 = vsel %vm239, %v205, %v238
      %vm241 = vcmp.eq.f32.partialorder %v205, 0.0
      %v242 = vand.u32 %v205, 2147483648
      %v243 = vsel %vm241, %v242, %v240
      %v244 = vrsqrt.pop %v206
      %v245 = vmul.f32 %v206, %v244
      %vm246 = vcmp.eq.f32.partialorder %v206, inf
      %v247 = vsel %vm246, %v206, %v245
      %vm248 = vcmp.eq.f32.partialorder %v206, 0.0
      %v249 = vand.u32 %v206, 2147483648
      %v250 = vsel %vm248, %v249, %v247
      %v251 = vrsqrt.pop %v207
      %v252 = vmul.f32 %v207, %v251
      %vm253 = vcmp.eq.f32.partialorder %v207, inf
      %v254 = vsel %vm253, %v207, %v252
      %vm255 = vcmp.eq.f32.partialorder %v207, 0.0
      %v256 = vand.u32 %v207, 2147483648
      %v257 = vsel %vm255, %v256, %v254
      %v258 = vrsqrt.pop %v208
      %v259 = vmul.f32 %v208, %v258
      %vm260 = vcmp.eq.f32.partialorder %v208, inf
      %v261 = vsel %vm260, %v208, %v259
      %vm262 = vcmp.eq.f32.partialorder %v208, 0.0
      %v263 = vand.u32 %v208, 2147483648
      %v264 = vsel %vm262, %v263, %v261
      %vm265 = vcmask 7168
      %266 = vst.msk [vmem:[%s118] sm:$0xff] %vm265, %v215
      %267 = vst.msk [vmem:[%s118 + $0x8] sm:$0xff] %vm265, %v222
      %268 = vst.msk [vmem:[%s118 + $0x10] sm:$0xff] %vm265, %v229
      %269 = vst.msk [vmem:[%s118 + $0x18] sm:$0xff] %vm265, %v236
      %270 = vst.msk [vmem:[%s118 + $0x20] sm:$0xff] %vm265, %v243
      %271 = vst.msk [vmem:[%s118 + $0x28] sm:$0xff] %vm265, %v250
      %272 = vst.msk [vmem:[%s118 + $0x30] sm:$0xff] %vm265, %v257
      %273 = vst.msk [vmem:[%s118 + $0x38] sm:$0xff] %vm265, %v264
      %s274 = smul.u32 8, %s12
      %p275 = scmp.lt.s32.totalorder %s274, 15
      %s276 = scalar_select %p275, %s274, 15
      %s277 = smul.addr %s276, 8
      %s278 = scalar_lea.vmem %s1, %s277
      // Predicated region
      $region25: #{tpu_custom_call.1} parent=23 // pred_check
        %p279 = pneg %p56
      $region26: #{tpu_custom_call.1} parent=23 // pred_check_branch
        %281 = sbr.rel (%p279) target = $region28
      $region27: #{tpu_custom_call.1} parent=23 // pred_region
        %s282 = smul.u32 8, %s12
      $region28: #{tpu_custom_call.1} parent=23 // pred_fallthru
        _
    $region24: #{tpu_custom_call.1} parent=5 // pred_fallthru
      _
    %p283 = scmp.le.s32.totalorder 2, %s7
    // Predicated region
    $region29: #{tpu_custom_call.1} parent=5 // pred_check
      %p284 = pneg %p283
    $region30: #{tpu_custom_call.1} parent=5 // pred_check_branch
      %286 = sbr.rel (%p284) target = $region32
    $region31: #{tpu_custom_call.1} parent=5 // pred_region
      %s287 = ssub.s32 %s7, 2
      // Predicated region
      $region33: #{tpu_custom_call.1} parent=31 // pred_check
        %p288 = pneg %p62
      $region34: #{tpu_custom_call.1} parent=31 // pred_check_branch
        %290 = sbr.rel (%p288) target = $region36
      $region35: #{tpu_custom_call.1} parent=31 // pred_region
        %s291 = smul.u32 8, %s13
        %p292 = scmp.lt.s32.totalorder %s291, 15
        %s293 = scalar_select %p292, %s291, 15
        %s294 = smul.addr %s293, 8
        %s295 = scalar_lea.vmem %s1, %s294
      $region36: #{tpu_custom_call.1} parent=31 // pred_fallthru
        _
    $region32: #{tpu_custom_call.1} parent=5 // pred_fallthru
      _
  $region6: #{tpu_custom_call.1} parent=0 // loop_footer
    %s11 = sadd.s32 1, %s7
  $region7: #{tpu_custom_call.1} parent=0 // loop_footer_branch
    %6 = sbr.rel target = $region3
  $region8: #{tpu_custom_call.1} parent=0 // loop_exit
    _

</llo_original>
